<compile_context>
chip_gen: v7x
topology: tpu7x:2x2x1
jax: 0.10.0
libtpu: 0.0.40
codegen_flags: <defaults>
</compile_context>

<pallas_src>
import jax
import jax.numpy as jnp
from jax.experimental import pallas as pl
from jax.experimental.pallas import tpu as pltpu

_LANE = 128          # TPU lane width (last-dim granularity)
_SUBLANE_BF16 = 16   # bf16 packs 16 rows per vreg sublane group


def _round_up(x, m):
    return ((x + m - 1) // m) * m


def fc_kernel(x_ref, wt_ref, b_ref, o_ref):
    # x_ref : (TB, D)   feature tile, native dtype (streamed per batch tile)
    # wt_ref: (D, TC)   transposed fc weight tile, bf16 (resident over batch axis)
    # b_ref : (1, TC)   bias tile, f32
    # o_ref : (TB, TC)  logits tile, f32
    # Cast the already-VMEM-resident activations to the narrow weight dtype on
    # the VPU (free under the weight DMA) instead of a wrapper-side HBM pass.
    x = x_ref[...].astype(wt_ref.dtype)
    acc = jnp.dot(x, wt_ref[...], preferred_element_type=jnp.float32)
    o_ref[...] = (acc + b_ref[...]).astype(o_ref.dtype)


def _choose_class_tile(c_pad):
    """Pick the class-strip tile width (multiple of 128 lanes).

    Aim for >= 2 class tiles whenever possible so v7x megacore sharding lands on
    the class axis (each core streams a disjoint half of the weight) instead of
    duplicating the weight read across batch halves. Cap each strip at 2048
    columns so a double-buffered (512, tc) bf16 strip stays small in VMEM.
    """
    if c_pad <= _LANE:
        return c_pad
    n_tiles = max(2, pl.cdiv(c_pad, 2048))
    return _round_up(pl.cdiv(c_pad, n_tiles), _LANE)


def prepare_fc_params(fc_weight, fc_bias, *, compute_dtype=jnp.bfloat16):
    """One-time classifier-parameter prep (call at update_fc time, NOT per forward).

    - Transposes the PyTorch-layout (C, D) weight to (D, C).
    - Casts the weight to the (narrow) compute dtype (default bf16; f32 MXU
      accumulation keeps the epilogue exact).
    - Pads the class dim to a multiple of the chosen class tile, so the forward
      never has to jnp.pad (which would re-materialize the weight in HBM).
    Returns (wt, bias2d, class_tile, num_classes).
    """
    C, D = fc_weight.shape
    c_pad = _round_up(max(C, 1), _LANE)
    tc = _choose_class_tile(c_pad)
    c_grid = _round_up(c_pad, tc)

    wt = jnp.zeros((D, c_grid), dtype=compute_dtype)
    wt = wt.at[:, :C].set(fc_weight.T.astype(compute_dtype))
    bias2d = jnp.zeros((1, c_grid), dtype=jnp.float32)
    bias2d = bias2d.at[:, :C].set(fc_bias.astype(jnp.float32))
    return wt, bias2d, tc, C


def incremental_net_forward(features, wt, bias2d, class_tile, num_classes):
    """logits = features @ W^T + b   (SimpleLinear head of IncrementalNet).

    `wt` / `bias2d` / `class_tile` come from prepare_fc_params:
    wt is (D, C_grid) in the compute dtype, bias2d is (1, C_grid) f32, and
    C_grid is already a multiple of class_tile.
    """
    B, D = features.shape
    Dw, C_grid = wt.shape
    assert D == Dw, "feature dim mismatch with classifier weight"
    assert C_grid % class_tile == 0, "prepare_fc_params guarantees divisibility"
    tc = class_tile

    # ---- batch tiling: whole batch in one tile when small (single MXU pass),
    #      512-row tiles otherwise (~85% of HBM roofline on v6e vs ~63% at 256)
    #      while staying inside v7x's 32 MiB scoped VMEM with bf16 weights.
    #      Rows rounded to multiples of 16 for clean bf16 vreg packing.
    B_pad = _round_up(max(B, 1), _SUBLANE_BF16)
    tb = B_pad if B_pad <= 512 else 512
    B_grid = _round_up(B_pad, tb)

    x = features  # native dtype; cast happens inside the kernel
    if B_grid != B:
        x = jnp.pad(x, ((0, B_grid - B), (0, 0)))

    # Grid: class tiles OUTER, batch tiles INNER. The weight's index_map depends
    # only on the outer axis, so the (D, tc) strip stays VMEM-resident while the
    # (small) feature tiles stream on the inner axis.
    grid = (C_grid // tc, B_grid // tb)

    w_bytes = D * C_grid * jnp.dtype(wt.dtype).itemsize
    x_bytes = B_grid * D * jnp.dtype(x.dtype).itemsize * (C_grid // tc)
    o_bytes = B_grid * C_grid * 4
    cost = pl.CostEstimate(
        flops=2 * B_grid * D * C_grid,
        transcendentals=0,
        bytes_accessed=w_bytes + x_bytes + C_grid * 4 + o_bytes,
    )

    logits_pad = pl.pallas_call(
        fc_kernel,
        out_shape=jax.ShapeDtypeStruct((B_grid, C_grid), jnp.float32),
        grid_spec=pltpu.PrefetchScalarGridSpec(
            num_scalar_prefetch=0,
            grid=grid,
            in_specs=[
                pl.BlockSpec((tb, D), lambda j, i: (i, 0)),   # features (streamed)
                pl.BlockSpec((D, tc), lambda j, i: (0, j)),   # W^T (resident over inner axis)
                pl.BlockSpec((1, tc), lambda j, i: (0, j)),   # bias
            ],
            out_specs=pl.BlockSpec((tb, tc), lambda j, i: (i, j)),
        ),
        compiler_params=pltpu.CompilerParams(
            dimension_semantics=("parallel", "parallel")),
        cost_estimate=cost,
    )(x, wt, bias2d)

    logits = logits_pad[:B, :num_classes]

    # Mirror the PyTorch dict semantics of IncrementalNet.forward.
    return {"logits": logits, "features": features}


if __name__ == "__main__":
    # CLIP ViT-B-16 feature dim = 512. Small batch; nb_classes = 20 (a realistic
    # incremental-learning class count that is NOT a multiple of 128, to
    # exercise the padding path).
    B, D, C = 8, 512, 20

    key = jax.random.PRNGKey(0)
    k_feat, k_w, k_b = jax.random.split(key, 3)

    # "features" stand in for convnet(x)['features'].
    features = jax.random.normal(k_feat, (B, D), dtype=jnp.float32)
    # SimpleLinear(512, C) parameters in PyTorch layout (out, in).
    fc_weight = jax.random.normal(k_w, (C, D), dtype=jnp.float32) * 0.02
    fc_bias = jax.random.normal(k_b, (C,), dtype=jnp.float32) * 0.01

    # Hoisted, once-per-update_fc parameter prep (transpose + bf16 cast + pad).
    wt, bias2d, class_tile, num_classes = prepare_fc_params(
        fc_weight, fc_bias, compute_dtype=jnp.bfloat16)

    out = incremental_net_forward(features, wt, bias2d, class_tile, num_classes)
    logits = jax.block_until_ready(out["logits"])
    assert logits.shape == (B, C)

    # Reference check: bf16 weights/activations with f32 accumulation (matches
    # the kernel's compute path), plus a loose sanity check vs full-f32 math.
    ref_bf16 = (jnp.dot(features.astype(jnp.bfloat16),
                        fc_weight.T.astype(jnp.bfloat16),
                        preferred_element_type=jnp.float32) + fc_bias)
    ref_f32 = features @ fc_weight.T + fc_bias
    assert jnp.allclose(logits, ref_bf16, atol=1e-3, rtol=1e-3)
    assert jnp.allclose(logits, ref_f32, atol=5e-2, rtol=5e-2)

    print("KERNEL_OK")
</pallas_src>

<mosaic_0001>
module attributes {stable_mosaic.version = 11 : i64} {
  func.func @fc_kernel(%arg0: i32, %arg1: i32, %arg2: memref<16x512xf32, #tpu.memory_space<vmem>>, %arg3: memref<512x128xbf16, #tpu.memory_space<vmem>>, %arg4: memref<1x128xf32, #tpu.memory_space<vmem>>, %arg5: memref<16x128xf32, #tpu.memory_space<vmem>>) attributes {dimension_semantics = [#tpu.dimension_semantics<parallel>, #tpu.dimension_semantics<parallel>], iteration_bounds = array<i64: 1, 1>, scalar_prefetch = 0 : i64, scratch_operands = 0 : i64, tpu.core_type = #tpu.core_type<tc>, window_params = [{transform_indices = @transform_0, window_bounds = array<i64: 16, 512>}, {transform_indices = @transform_1, window_bounds = array<i64: 512, 128>}, {transform_indices = @transform_2, window_bounds = array<i64: 1, 128>}, {transform_indices = @transform_3, window_bounds = array<i64: 16, 128>}]} {
    %c0 = arith.constant 0 : index
    %c0_0 = arith.constant 0 : index
    %0 = vector.load %arg2[%c0, %c0_0] : memref<16x512xf32, #tpu.memory_space<vmem>>, vector<16x512xf32>
    %1 = arith.truncf %0 : vector<16x512xf32> to vector<16x512xbf16>
    %c0_1 = arith.constant 0 : index
    %c0_2 = arith.constant 0 : index
    %2 = vector.load %arg3[%c0_1, %c0_2] : memref<512x128xbf16, #tpu.memory_space<vmem>>, vector<512x128xbf16>
    %cst = arith.constant dense<0.000000e+00> : vector<16x128xf32>
    %3 = tpu.matmul %1, %2, %cst {dimension_numbers = #tpu.dot_dimension_numbers<[1], [0], [0], [1], [0, 0, 1, 1], [], []>} : vector<16x512xbf16>, vector<512x128xbf16>, vector<16x128xf32> -> vector<16x128xf32>
    %c0_3 = arith.constant 0 : index
    %c0_4 = arith.constant 0 : index
    %4 = vector.load %arg4[%c0_3, %c0_4] : memref<1x128xf32, #tpu.memory_space<vmem>>, vector<1x128xf32>
    %5 = vector.broadcast %4 : vector<1x128xf32> to vector<16x128xf32>
    %6 = arith.addf %3, %5 : vector<16x128xf32>
    %c0_5 = arith.constant 0 : index
    %c0_6 = arith.constant 0 : index
    %7 = vector.load %arg5[%c0_5, %c0_6] : memref<16x128xf32, #tpu.memory_space<vmem>>, vector<16x128xf32>
    tpu.vector_store %arg5[%c0_5, %c0_6], %6 {strides = array<i32>} : memref<16x128xf32, #tpu.memory_space<vmem>>, vector<16x128xf32>,
    return
  }
  func.func @transform_0(%arg0: i32, %arg1: i32) -> (i32, i32) {
    %c0_i32 = arith.constant 0 : i32
    %c0_i32_0 = arith.constant 0 : i32
    return %arg1, %c0_i32 : i32, i32
  }
  func.func @transform_1(%arg0: i32, %arg1: i32) -> (i32, i32) {
    %c0_i32 = arith.constant 0 : i32
    %c0_i32_0 = arith.constant 0 : i32
    return %c0_i32, %arg0 : i32, i32
  }
  func.func @transform_2(%arg0: i32, %arg1: i32) -> (i32, i32) {
    %c0_i32 = arith.constant 0 : i32
    %c0_i32_0 = arith.constant 0 : i32
    return %c0_i32, %arg0 : i32, i32
  }
  func.func @transform_3(%arg0: i32, %arg1: i32) -> (i32, i32) {
    %c0_i32 = arith.constant 0 : i32
    return %arg1, %arg0 : i32, i32
  }
}

</mosaic_0001>

<llo_original>
// kernel: tpu_custom_call.1
$region0: #{tpu_custom_call.1}
  #allocation0 [shape = 'u32[]', space=smem, size = 0x4, offset = 0x4, fixed_abs, tag = 'smem constant byte address 0x4 - core index']
  #allocation1 [shape = 'u32[144,128]{1,0:T(1,128)}', space=vmem, size = 0x12000, scoped, tag = 'internal scratch']
  %s0 = inlined_call_operand.hbm [shape: f32[16,512], index: 0, kind: input, shape index: {}]
  %s1 = inlined_call_operand.hbm [shape: bf16[512,128], index: 1, kind: input, shape index: {}]
  %s2 = inlined_call_operand.vmem [shape: f32[1,128], index: 2, kind: input, shape index: {}]
  %s3 = inlined_call_operand.hbm [shape: f32[16,128], index: 3, kind: output, shape index: {}]
  %s4 = sld [smem:[#allocation0]]
  $region30: #{tpu_custom_call.1} parent=0
    _
  %s6 = ssub.s32 1, %s4
  %s7 = scalar_select 0, %s6, %s4
  $region1: #{tpu_custom_call.1} parent=0
    #allocation2 [shape = 'u8[32768]{0}', space=vmem, size = 0x8000, scoped, tag = 'input window, operand 0, single buffered']
    #allocation3 [shape = 's32[1]{0}', space=sflag, size = 0x4, scoped, tag = 'scoped memory for tpu_custom_call.1']
    #allocation4 [shape = 's32[1]{0}', space=sflag, size = 0x4, scoped, tag = 'scoped memory for tpu_custom_call.1']
    #allocation5 [shape = 'u8[131072]{0}', space=vmem, size = 0x20000, scoped, tag = 'input window, operand 1, single buffered']
    #allocation6 [shape = 's32[1]{0}', space=sflag, size = 0x4, scoped, tag = 'scoped memory for tpu_custom_call.1']
    #allocation7 [shape = 'u8[8192]{0}', space=vmem, size = 0x2000, scoped, tag = 'output window, operand 0, single buffered']
    %8 = vsyncpa [#allocation3], 0
    %9 = vsyncpa [#allocation6], 0
    %10 = vsyncpa [#allocation4], 0
    // Predicated region
    $region2: #{tpu_custom_call.1} parent=1 // pred_check
      _
    $region3: #{tpu_custom_call.1} parent=1 // pred_check_branch
      %12 = sbr.rel (0) target = $region5
    $region4: #{tpu_custom_call.1} parent=1 // pred_region
      %s14 = ssub.s32 1024, 1024
      %15 = vsyncadd [#allocation3], %s14
      %s16 = sshll.u32 [#allocation2], 4
      %s17 = int_to_ptr.vmem [resolvable:$true] %s16
      %22 = dma.hbm_to_vmem [thread:$0]  %s0, 1024, %s17, [#allocation3], 512, 512, 32
    $region5: #{tpu_custom_call.1} parent=1 // pred_fallthru
      _
    // Predicated region
    $region6: #{tpu_custom_call.1} parent=1 // pred_check
      _
    $region7: #{tpu_custom_call.1} parent=1 // pred_check_branch
      %24 = sbr.rel (0) target = $region9
    $region8: #{tpu_custom_call.1} parent=1 // pred_region
      %s26 = ssub.s32 4096, 4096
      %27 = vsyncadd [#allocation6], %s26
      %s28 = sshll.u32 [#allocation5], 4
      %s29 = int_to_ptr.vmem [resolvable:$true] %s28
      %34 = dma.hbm_to_vmem [thread:$0]  %s1, 4096, %s29, [#allocation6], 64, 64, 4
    $region9: #{tpu_custom_call.1} parent=1 // pred_fallthru
      _
    // Predicated region
    $region10: #{tpu_custom_call.1} parent=1 // pred_check
      _
    $region11: #{tpu_custom_call.1} parent=1 // pred_check_branch
      %36 = sbr.rel (0) target = $region13
    $region12: #{tpu_custom_call.1} parent=1 // pred_region
      _
    $region13: #{tpu_custom_call.1} parent=1 // pred_fallthru
      _
    // Predicated region
    $region14: #{tpu_custom_call.1} parent=1 // pred_check
      _
    $region15: #{tpu_custom_call.1} parent=1 // pred_check_branch
      %38 = sbr.rel (0) target = $region17
    $region16: #{tpu_custom_call.1} parent=1 // pred_region
      %39 = dma.done [#allocation3], 1024
    $region17: #{tpu_custom_call.1} parent=1 // pred_fallthru
      _
    // Predicated region
    $region18: #{tpu_custom_call.1} parent=1 // pred_check
      _
    $region19: #{tpu_custom_call.1} parent=1 // pred_check_branch
      %41 = sbr.rel (0) target = $region21
    $region20: #{tpu_custom_call.1} parent=1 // pred_region
      %42 = dma.done [#allocation6], 4096
    $region21: #{tpu_custom_call.1} parent=1 // pred_fallthru
      _
    %v44 = vld [vmem:[#allocation2] sm:$0xff]
    %v45 = vld [vmem:[#allocation2 + $0x8] sm:$0xff]
    %v46 = vld [vmem:[#allocation2 + $0x10] sm:$0xff]
    %v47 = vld [vmem:[#allocation2 + $0x18] sm:$0xff]
    %v48 = vld [vmem:[#allocation2 + $0x20] sm:$0xff]
    %v49 = vld [vmem:[#allocation2 + $0x28] sm:$0xff]
    %v50 = vld [vmem:[#allocation2 + $0x30] sm:$0xff]
    %v51 = vld [vmem:[#allocation2 + $0x38] sm:$0xff]
    %v52 = vpack.c.bf16 %v48, %v44
    %v53 = vpack.c.bf16 %v49, %v45
    %v54 = vpack.c.bf16 %v50, %v46
    %v55 = vpack.c.bf16 %v51, %v47
    %v56 = vld [vmem:[#allocation5] sm:$0xf]
    %v57 = vld [vmem:[#allocation5 + $0x4] sm:$0xf]
    %v58 = vld [vmem:[#allocation5 + $0x8] sm:$0xf]
    %v59 = vld [vmem:[#allocation5 + $0xc] sm:$0xf]
    %v60 = vld [vmem:[#allocation5 + $0x10] sm:$0xf]
    %v61 = vld [vmem:[#allocation5 + $0x14] sm:$0xf]
    %v62 = vld [vmem:[#allocation5 + $0x18] sm:$0xf]
    %v63 = vld [vmem:[#allocation5 + $0x1c] sm:$0xf]
    %v64 = vld [vmem:[#allocation5 + $0x20] sm:$0xf]
    %v65 = vld [vmem:[#allocation5 + $0x24] sm:$0xf]
    %v66 = vld [vmem:[#allocation5 + $0x28] sm:$0xf]
    %v67 = vld [vmem:[#allocation5 + $0x2c] sm:$0xf]
    %v68 = vld [vmem:[#allocation5 + $0x30] sm:$0xf]
    %v69 = vld [vmem:[#allocation5 + $0x34] sm:$0xf]
    %v70 = vld [vmem:[#allocation5 + $0x38] sm:$0xf]
    %v71 = vld [vmem:[#allocation5 + $0x3c] sm:$0xf]
    %v72 = vld [vmem:[#allocation5 + $0x40] sm:$0xf]
    %v73 = vld [vmem:[#allocation5 + $0x44] sm:$0xf]
    %v74 = vld [vmem:[#allocation5 + $0x48] sm:$0xf]
    %v75 = vld [vmem:[#allocation5 + $0x4c] sm:$0xf]
    %v76 = vld [vmem:[#allocation5 + $0x50] sm:$0xf]
    %v77 = vld [vmem:[#allocation5 + $0x54] sm:$0xf]
    %v78 = vld [vmem:[#allocation5 + $0x58] sm:$0xf]
    %v79 = vld [vmem:[#allocation5 + $0x5c] sm:$0xf]
    %v80 = vld [vmem:[#allocation5 + $0x60] sm:$0xf]
    %v81 = vld [vmem:[#allocation5 + $0x64] sm:$0xf]
    %v82 = vld [vmem:[#allocation5 + $0x68] sm:$0xf]
    %v83 = vld [vmem:[#allocation5 + $0x6c] sm:$0xf]
    %v84 = vld [vmem:[#allocation5 + $0x70] sm:$0xf]
    %v85 = vld [vmem:[#allocation5 + $0x74] sm:$0xf]
    %v86 = vld [vmem:[#allocation5 + $0x78] sm:$0xf]
    %v87 = vld [vmem:[#allocation5 + $0x7c] sm:$0xf]
    %v88 = vld [vmem:[#allocation5 + $0x80] sm:$0xf]
    %v89 = vld [vmem:[#allocation5 + $0x84] sm:$0xf]
    %v90 = vld [vmem:[#allocation5 + $0x88] sm:$0xf]
    %v91 = vld [vmem:[#allocation5 + $0x8c] sm:$0xf]
    %v92 = vld [vmem:[#allocation5 + $0x90] sm:$0xf]
    %v93 = vld [vmem:[#allocation5 + $0x94] sm:$0xf]
    %v94 = vld [vmem:[#allocation5 + $0x98] sm:$0xf]
    %v95 = vld [vmem:[#allocation5 + $0x9c] sm:$0xf]
    %v96 = vld [vmem:[#allocation5 + $0xa0] sm:$0xf]
    %v97 = vld [vmem:[#allocation5 + $0xa4] sm:$0xf]
    %v98 = vld [vmem:[#allocation5 + $0xa8] sm:$0xf]
    %v99 = vld [vmem:[#allocation5 + $0xac] sm:$0xf]
    %v100 = vld [vmem:[#allocation5 + $0xb0] sm:$0xf]
    %v101 = vld [vmem:[#allocation5 + $0xb4] sm:$0xf]
    %v102 = vld [vmem:[#allocation5 + $0xb8] sm:$0xf]
    %v103 = vld [vmem:[#allocation5 + $0xbc] sm:$0xf]
    %v104 = vld [vmem:[#allocation5 + $0xc0] sm:$0xf]
    %v105 = vld [vmem:[#allocation5 + $0xc4] sm:$0xf]
    %v106 = vld [vmem:[#allocation5 + $0xc8] sm:$0xf]
    %v107 = vld [vmem:[#allocation5 + $0xcc] sm:$0xf]
    %v108 = vld [vmem:[#allocation5 + $0xd0] sm:$0xf]
    %v109 = vld [vmem:[#allocation5 + $0xd4] sm:$0xf]
    %v110 = vld [vmem:[#allocation5 + $0xd8] sm:$0xf]
    %v111 = vld [vmem:[#allocation5 + $0xdc] sm:$0xf]
    %v112 = vld [vmem:[#allocation5 + $0xe0] sm:$0xf]
    %v113 = vld [vmem:[#allocation5 + $0xe4] sm:$0xf]
    %v114 = vld [vmem:[#allocation5 + $0xe8] sm:$0xf]
    %v115 = vld [vmem:[#allocation5 + $0xec] sm:$0xf]
    %v116 = vld [vmem:[#allocation5 + $0xf0] sm:$0xf]
    %v117 = vld [vmem:[#allocation5 + $0xf4] sm:$0xf]
    %v118 = vld [vmem:[#allocation5 + $0xf8] sm:$0xf]
    %v119 = vld [vmem:[#allocation5 + $0xfc] sm:$0xf]
    %v120 = vld [vmem:[%s2] sm:$0x1]
    %v122 = vlaneseq
    %v123 = vshrl.u32 %v122, 7
    %v124 = vsub.s32 0, %v123
    %v125 = vrot.slane %v120, %v124
    %v191 = vunpack.c.l.b16 %v56
    %v192 = vunpack.c.l.b16 %v57
    %v193 = vunpack.c.l.b16 %v58
    %v194 = vunpack.c.l.b16 %v59
    %v195 = vunpack.c.l.b16 %v60
    %v196 = vunpack.c.l.b16 %v61
    %v197 = vunpack.c.l.b16 %v62
    %v198 = vunpack.c.l.b16 %v63
    %v199 = vunpack.c.l.b16 %v64
    %v200 = vunpack.c.l.b16 %v65
    %v201 = vunpack.c.l.b16 %v66
    %v202 = vunpack.c.l.b16 %v67
    %v203 = vunpack.c.l.b16 %v68
    %v204 = vunpack.c.l.b16 %v69
    %v205 = vunpack.c.l.b16 %v70
    %v206 = vunpack.c.l.b16 %v71
    %v207 = vunpack.c.l.b16 %v72
    %v208 = vunpack.c.l.b16 %v73
    %v209 = vunpack.c.l.b16 %v74
    %v210 = vunpack.c.l.b16 %v75
    %v211 = vunpack.c.l.b16 %v76
    %v212 = vunpack.c.l.b16 %v77
    %v213 = vunpack.c.l.b16 %v78
    %v214 = vunpack.c.l.b16 %v79
    %v215 = vunpack.c.l.b16 %v80
    %v216 = vunpack.c.l.b16 %v81
    %v217 = vunpack.c.l.b16 %v82
    %v218 = vunpack.c.l.b16 %v83
    %v219 = vunpack.c.l.b16 %v84
    %v220 = vunpack.c.l.b16 %v85
    %v221 = vunpack.c.l.b16 %v86
    %v222 = vunpack.c.l.b16 %v87
    %v223 = vunpack.c.l.b16 %v88
    %v224 = vunpack.c.l.b16 %v89
    %v225 = vunpack.c.l.b16 %v90
    %v226 = vunpack.c.l.b16 %v91
    %v227 = vunpack.c.l.b16 %v92
    %v228 = vunpack.c.l.b16 %v93
    %v229 = vunpack.c.l.b16 %v94
    %v230 = vunpack.c.l.b16 %v95
    %v231 = vunpack.c.l.b16 %v96
    %v232 = vunpack.c.l.b16 %v97
    %v233 = vunpack.c.l.b16 %v98
    %v234 = vunpack.c.l.b16 %v99
    %v235 = vunpack.c.l.b16 %v100
    %v236 = vunpack.c.l.b16 %v101
    %v237 = vunpack.c.l.b16 %v102
    %v238 = vunpack.c.l.b16 %v103
    %v239 = vunpack.c.l.b16 %v104
    %v240 = vunpack.c.l.b16 %v105
    %v241 = vunpack.c.l.b16 %v106
    %v242 = vunpack.c.l.b16 %v107
    %v243 = vunpack.c.l.b16 %v108
    %v244 = vunpack.c.l.b16 %v109
    %v245 = vunpack.c.l.b16 %v110
    %v246 = vunpack.c.l.b16 %v111
    %v247 = vunpack.c.l.b16 %v112
    %v248 = vunpack.c.l.b16 %v113
    %v249 = vunpack.c.l.b16 %v114
    %v250 = vunpack.c.l.b16 %v115
    %v251 = vunpack.c.l.b16 %v116
    %v252 = vunpack.c.l.b16 %v117
    %v253 = vunpack.c.l.b16 %v118
    %v254 = vunpack.c.l.b16 %v119
    %v255 = vpack.c.b16 %v192, %v191
    %v256 = vpack.c.b16 %v194, %v193
    %v257 = vpack.c.b16 %v196, %v195
    %v258 = vpack.c.b16 %v198, %v197
    %v259 = vpack.c.b16 %v200, %v199
    %v260 = vpack.c.b16 %v202, %v201
    %v261 = vpack.c.b16 %v204, %v203
    %v262 = vpack.c.b16 %v206, %v205
    %v263 = vpack.c.b16 %v208, %v207
    %v264 = vpack.c.b16 %v210, %v209
    %v265 = vpack.c.b16 %v212, %v211
    %v266 = vpack.c.b16 %v214, %v213
    %v267 = vpack.c.b16 %v216, %v215
    %v268 = vpack.c.b16 %v218, %v217
    %v269 = vpack.c.b16 %v220, %v219
    %v270 = vpack.c.b16 %v222, %v221
    %v271 = vpack.c.b16 %v224, %v223
    %v272 = vpack.c.b16 %v226, %v225
    %v273 = vpack.c.b16 %v228, %v227
    %v274 = vpack.c.b16 %v230, %v229
    %v275 = vpack.c.b16 %v232, %v231
    %v276 = vpack.c.b16 %v234, %v233
    %v277 = vpack.c.b16 %v236, %v235
    %v278 = vpack.c.b16 %v238, %v237
    %v279 = vpack.c.b16 %v240, %v239
    %v280 = vpack.c.b16 %v242, %v241
    %v281 = vpack.c.b16 %v244, %v243
    %v282 = vpack.c.b16 %v246, %v245
    %v283 = vpack.c.b16 %v248, %v247
    %v284 = vpack.c.b16 %v250, %v249
    %v285 = vpack.c.b16 %v252, %v251
    %v286 = vpack.c.b16 %v254, %v253
    %319 = vmatprep.subr.bf16.mxu0 0
    %320 = vmatpush1.bf16.msra.mxu0 %v255
    %321 = vmatprep.subr.bf16.mxu0 0
    %322 = vmatpush1.bf16.msra.mxu0 %v256
    %323 = vmatprep.subr.bf16.mxu0 0
    %324 = vmatpush1.bf16.msra.mxu0 %v257
    %325 = vmatprep.subr.bf16.mxu0 0
    %326 = vmatpush1.bf16.msra.mxu0 %v258
    %327 = vmatprep.subr.bf16.mxu0 0
    %328 = vmatpush1.bf16.msra.mxu0 %v259
    %329 = vmatprep.subr.bf16.mxu0 0
    %330 = vmatpush1.bf16.msra.mxu0 %v260
    %331 = vmatprep.subr.bf16.mxu0 0
    %332 = vmatpush1.bf16.msra.mxu0 %v261
    %333 = vmatprep.subr.bf16.mxu0 0
    %334 = vmatpush1.bf16.msra.mxu0 %v262
    %335 = vmatprep.subr.bf16.mxu0 0
    %336 = vmatpush1.bf16.msra.mxu0 %v263
    %337 = vmatprep.subr.bf16.mxu0 0
    %338 = vmatpush1.bf16.msra.mxu0 %v264
    %339 = vmatprep.subr.bf16.mxu0 0
    %340 = vmatpush1.bf16.msra.mxu0 %v265
    %341 = vmatprep.subr.bf16.mxu0 0
    %342 = vmatpush1.bf16.msra.mxu0 %v266
    %343 = vmatprep.subr.bf16.mxu0 0
    %344 = vmatpush1.bf16.msra.mxu0 %v267
    %345 = vmatprep.subr.bf16.mxu0 0
    %346 = vmatpush1.bf16.msra.mxu0 %v268
    %347 = vmatprep.subr.bf16.mxu0 0
    %348 = vmatpush1.bf16.msra.mxu0 %v269
    %349 = vmatprep.subr.bf16.mxu0 0
    %350 = vmatpush1.bf16.msra.mxu0 %v270
    %351 = vmatprep.mubr.bf16.mxu0 %v53
    %352 = vmatmul.mubr.bf16.gmra.mrb[0].mxu0 %v52
    %v353 = vpop.f32.mrb[0].mxu0
    %v354 = vadd.f32 %v125, %v353
    %v355 = vpop.f32.mrb[0].mxu0
    %v356 = vpop.f32.mrb[0].mxu0
    %v357 = vadd.f32 %v125, %v356
    %v358 = vpop.f32.mrb[0].mxu0
    %359 = vdwg.mxu0
    %360 = vmatprep.subr.bf16.mxu0 0
    %361 = vmatpush1.bf16.msra.mxu0 %v271
    %362 = vmatprep.subr.bf16.mxu0 0
    %363 = vmatpush1.bf16.msra.mxu0 %v272
    %364 = vmatprep.subr.bf16.mxu0 0
    %365 = vmatpush1.bf16.msra.mxu0 %v273
    %366 = vmatprep.subr.bf16.mxu0 0
    %367 = vmatpush1.bf16.msra.mxu0 %v274
    %368 = vmatprep.subr.bf16.mxu0 0
    %369 = vmatpush1.bf16.msra.mxu0 %v275
    %370 = vmatprep.subr.bf16.mxu0 0
    %371 = vmatpush1.bf16.msra.mxu0 %v276
    %372 = vmatprep.subr.bf16.mxu0 0
    %373 = vmatpush1.bf16.msra.mxu0 %v277
    %374 = vmatprep.subr.bf16.mxu0 0
    %375 = vmatpush1.bf16.msra.mxu0 %v278
    %376 = vmatprep.subr.bf16.mxu0 0
    %377 = vmatpush1.bf16.msra.mxu0 %v279
    %378 = vmatprep.subr.bf16.mxu0 0
    %379 = vmatpush1.bf16.msra.mxu0 %v280
    %380 = vmatprep.subr.bf16.mxu0 0
    %381 = vmatpush1.bf16.msra.mxu0 %v281
    %382 = vmatprep.subr.bf16.mxu0 0
    %383 = vmatpush1.bf16.msra.mxu0 %v282
    %384 = vmatprep.subr.bf16.mxu0 0
    %385 = vmatpush1.bf16.msra.mxu0 %v283
    %386 = vmatprep.subr.bf16.mxu0 0
    %387 = vmatpush1.bf16.msra.mxu0 %v284
    %388 = vmatprep.subr.bf16.mxu0 0
    %389 = vmatpush1.bf16.msra.mxu0 %v285
    %390 = vmatprep.subr.bf16.mxu0 0
    %391 = vmatpush1.bf16.msra.mxu0 %v286
    %392 = vmatprep.mubr.bf16.mxu0 %v55
    %393 = vmatmul.mubr.bf16.gmra.mrb[0].mxu0 %v54
    %v394 = vpop.f32.mrb[0].mxu0
    %v395 = vadd.f32 %v354, %v394
    %v396 = vpop.f32.mrb[0].mxu0
    %v397 = vpop.f32.mrb[0].mxu0
    %v398 = vadd.f32 %v357, %v397
    %v399 = vpop.f32.mrb[0].mxu0
    %400 = vdwg.mxu0
    %401 = vst [vmem:[#allocation7] sm:$0xff] %v395
    %402 = vst [vmem:[#allocation7 + $0x8] sm:$0xff] %v398
    // Predicated region
    $region22: #{tpu_custom_call.1} parent=1 // pred_check
      _
    $region23: #{tpu_custom_call.1} parent=1 // pred_check_branch
      %404 = sbr.rel (0) target = $region25
    $region24: #{tpu_custom_call.1} parent=1 // pred_region
      %s406 = ssub.s32 256, 256
      %407 = vsyncadd [#allocation4], %s406
      %s408 = sshll.u32 [#allocation7], 4
      %s409 = int_to_ptr.vmem [resolvable:$true] %s408
      %414 = dma.vmem_to_hbm [thread:$0]  %s409, 256, %s3, [#allocation4], 128, 128, 8
    $region25: #{tpu_custom_call.1} parent=1 // pred_fallthru
      _
    // Predicated region
    $region26: #{tpu_custom_call.1} parent=1 // pred_check
      _
    $region27: #{tpu_custom_call.1} parent=1 // pred_check_branch
      %416 = sbr.rel (0) target = $region29
    $region28: #{tpu_custom_call.1} parent=1 // pred_region
      %417 = dma.done [#allocation4], 256
    $region29: #{tpu_custom_call.1} parent=1 // pred_fallthru
      _
    %418 = vsyncpa [#allocation3], 1
    %419 = vsyncpa [#allocation6], 1
    %420 = vsyncpa [#allocation4], 1

</llo_original>
